<compile_context>
chip_gen: v7x
topology: tpu7x:2x2x1
jax: 0.10.0
libtpu: 0.0.40
codegen_flags: <defaults>
</compile_context>

<pallas_src>
import functools

import jax
import jax.numpy as jnp
from jax.experimental import pallas as pl
from jax.experimental.pallas import tpu as pltpu


def _cfg_kernel(x_ref, bias_ref, w1t_ref, w2t_ref, b2_ref, out_ref, *,
                total_scale, mxu_dtype, ew_dtype):
    """Fused (uncond + cond) model forward + classifier-free-guidance blend.

    x_ref    : (1, Cin,  THW)   one batch element, channels on sublanes (f32)
    bias_ref : (1, 2, Cmid, 1)  [b1 + t_emb ; b1 + t_emb + c_emb]      (f32)
    w1t_ref  : (Cmid, Cin)      first 1x1-conv weights, pre-transposed (bf16)
    w2t_ref  : (Cout, Cmid)     second 1x1-conv weights, pre-transposed (bf16)
    b2_ref   : (Cout, 1)        (f32)
    out_ref  : (1, Cout, THW)   (f32)
    """
    # --- first projection on the MXU (f32 accumulation) ----------------------
    # K = Cin is tiny, but the MXU is otherwise idle in this kernel, so the
    # matmul is effectively free and removes the dominant VALU load.
    x = x_ref[0].astype(mxu_dtype)                       # (Cin, THW)
    acc = jnp.dot(w1t_ref[...], x,
                  preferred_element_type=jnp.float32)    # (Cmid, THW) f32
    acc = acc.astype(ew_dtype)

    bias = bias_ref[0].astype(ew_dtype)                  # (2, Cmid, 1)

    def _silu(v):
        # x * sigmoid(x) == 0.5*x*(1 + tanh(0.5*x))  -> a single EUP tanh.
        h = v * 0.5
        return h + h * jnp.tanh(h)

    # --- CFG blend applied to hidden activations BEFORE the 2nd projection ---
    #   uncond + S*(cond - uncond) == W2 @ ((1-S)*h_u + S*h_c) + b2
    # (b2 cancels in the difference because the final layer is linear),
    # so ONE second matmul does the work of two.  Keep <= ~3 live full-width
    # (Cmid, THW) temporaries to avoid vreg spills.
    s = total_scale                                      # static Python float
    h = _silu(acc + bias[0]) * (1.0 - s)                 # unconditional branch
    h = h + _silu(acc + bias[1]) * s                     # conditional branch

    # --- second projection: single MXU matmul, f32 accumulation --------------
    out = jnp.dot(w2t_ref[...], h.astype(mxu_dtype),
                  preferred_element_type=jnp.float32)    # (Cout, THW)
    out_ref[0] = out + b2_ref[...]                       # lane-dense f32 store


def _pick_hw_tile(hw, batch, max_tile, target_programs=4):
    """Pick the largest lane-dense (multiple-of-128) tile dividing hw, capped
    at max_tile, such that batch * (hw // tile) >= target_programs so the
    ("parallel","parallel") grid can occupy both v7x TensorCores.  Small / odd
    spatial sizes fall back to one full-HW block."""
    cands = [t for t in range(128, min(hw, max_tile) + 1, 128) if hw % t == 0]
    if not cands:
        return hw
    for t in sorted(cands, reverse=True):
        if batch * (hw // t) >= target_programs:
            return t
    return cands[0]   # smallest lane-dense tile: maximizes program count


def _default_elementwise_dtype():
    """bf16 VPU/EUP exists on v6e / v7x but NOT on v5e (or older)."""
    try:
        kind = jax.devices()[0].device_kind.lower()
    except Exception:
        return jnp.float32
    if any(tag in kind for tag in ("v6", "v7", "7x")):
        return jnp.bfloat16
    return jnp.float32


def classifier_free_guidance(x_nchw, t, cond, params, guidance_scales, *,
                             mxu_dtype=jnp.bfloat16, elementwise_dtype=None,
                             max_hw_tile=512, target_programs=4):
    """CFG over the synthetic model.  x_nchw follows the PyTorch NCHW layout."""
    B, Cin, H, W = x_nchw.shape
    HW = H * W
    Cmid = params["w1"].shape[1]
    Cout = params["w2"].shape[1]

    if elementwise_dtype is None:
        elementwise_dtype = _default_elementwise_dtype()

    # ---- plain-JAX glue (tiny tensors) --------------------------------------
    # channel-sublane layout: NCHW -> (B, C, H*W) is a pure reshape; x stays
    # f32 (no wrapper-side staging cast -> no extra HBM pass over x).
    x = x_nchw.reshape(B, Cin, HW)

    # Sinusoidal time features -> linear projection to Cmid.
    tdim = params["wt"].shape[0]
    half = tdim // 2
    freqs = jnp.exp(-jnp.log(10000.0) * jnp.arange(half, dtype=jnp.float32) / half)
    ang = t.astype(jnp.float32)[:, None] * freqs[None, :]
    t_feat = jnp.concatenate([jnp.sin(ang), jnp.cos(ang)], axis=-1)    # (B, tdim)
    t_emb = t_feat @ params["wt"]                                      # (B, Cmid)
    c_emb = cond.astype(jnp.float32) @ params["wc"]                    # (B, Cmid)

    # Per-batch row constants folded once and packed into ONE kernel input:
    #   [:, 0] = b1 + t_emb (uncond bias), [:, 1] = that + c_emb (cond bias).
    bias_u = (t_emb + params["b1"])[:, :, None]                        # (B, Cmid, 1)
    bias_c = bias_u + c_emb[:, :, None]                                # (B, Cmid, 1)
    bias_uc = jnp.stack([bias_u, bias_c], axis=1)                      # (B, 2, Cmid, 1)

    # Weights pre-transposed and pre-cast ONCE for the MXU.
    w1t = params["w1"].T.astype(mxu_dtype)                             # (Cmid, Cin)
    w2t = params["w2"].T.astype(mxu_dtype)                             # (Cout, Cmid)
    b2c = params["b2"].reshape(Cout, 1).astype(jnp.float32)            # (Cout, 1)

    # guidance_scales is a static Python list (as in the PyTorch module) -> the
    # per-scale loop collapses to one static total scale.
    # TODO(synk): if guidance_scales ever become traced values, route them
    # through SMEM instead of baking them in at trace time.
    total_scale = float(sum(guidance_scales))

    thw = _pick_hw_tile(HW, B, max_hw_tile, target_programs)
    grid = (B, HW // thw)

    kern = functools.partial(_cfg_kernel, total_scale=total_scale,
                             mxu_dtype=mxu_dtype, ew_dtype=elementwise_dtype)
    out = pl.pallas_call(
        kern,
        out_shape=jax.ShapeDtypeStruct((B, Cout, HW), jnp.float32),
        grid=grid,
        in_specs=[
            pl.BlockSpec((1, Cin, thw), lambda b, h: (b, 0, h)),        # x (f32)
            pl.BlockSpec((1, 2, Cmid, 1), lambda b, h: (b, 0, 0, 0)),   # biases
            pl.BlockSpec((Cmid, Cin), lambda b, h: (0, 0)),             # w1^T
            pl.BlockSpec((Cout, Cmid), lambda b, h: (0, 0)),            # w2^T
            pl.BlockSpec((Cout, 1), lambda b, h: (0, 0)),               # b2
        ],
        out_specs=pl.BlockSpec((1, Cout, thw), lambda b, h: (b, 0, h)),
        compiler_params=pltpu.CompilerParams(
            dimension_semantics=("parallel", "parallel")),
    )(x, bias_uc, w1t, w2t, b2c)

    # (B, Cout, H*W) reshapes straight back to NCHW — no transpose.
    return out.reshape(B, Cout, H, W)


def _reference(x_nchw, t, cond, params, guidance_scales):
    """Pure-f32 JAX reference reproducing the PyTorch forward semantics."""
    B, C, H, W = x_nchw.shape
    x = jnp.transpose(x_nchw, (0, 2, 3, 1)).reshape(B, H * W, C).astype(jnp.float32)
    tdim = params["wt"].shape[0]
    half = tdim // 2
    freqs = jnp.exp(-jnp.log(10000.0) * jnp.arange(half, dtype=jnp.float32) / half)
    ang = t.astype(jnp.float32)[:, None] * freqs[None, :]
    t_emb = jnp.concatenate([jnp.sin(ang), jnp.cos(ang)], -1) @ params["wt"]

    def model(c_emb):
        pre = x @ params["w1"] + params["b1"] + t_emb[:, None, :]
        if c_emb is not None:
            pre = pre + c_emb[:, None, :]
        h = pre * jax.nn.sigmoid(pre)
        return h @ params["w2"] + params["b2"]

    uncond = model(None)
    condi = model(cond.astype(jnp.float32) @ params["wc"])
    guidance = jnp.zeros_like(uncond)
    for s in guidance_scales:
        guidance = guidance + s * (condi - uncond)
    out = guidance + uncond
    return jnp.transpose(out.reshape(B, H, W, -1), (0, 3, 1, 2))


if __name__ == "__main__":
    B, C, H, W = 2, 4, 16, 16
    Cmid, Dcond, Tdim = 32, 8, 16
    guidance_scales = [1.5, 0.5]

    key = jax.random.PRNGKey(0)
    k = jax.random.split(key, 8)
    params = {
        "w1": 0.2 * jax.random.normal(k[0], (C, Cmid), jnp.float32),
        "b1": 0.1 * jax.random.normal(k[1], (1, Cmid), jnp.float32),
        "w2": 0.2 * jax.random.normal(k[2], (Cmid, C), jnp.float32),
        "b2": 0.1 * jax.random.normal(k[3], (1, C), jnp.float32),
        "wt": 0.2 * jax.random.normal(k[4], (Tdim, Cmid), jnp.float32),
        "wc": 0.2 * jax.random.normal(k[5], (Dcond, Cmid), jnp.float32),
    }

    x = jax.random.normal(k[6], (B, C, H, W), jnp.float32)
    t = jnp.array([3, 17], dtype=jnp.int32)
    cond = jax.random.normal(k[7], (B, Dcond), jnp.float32)

    out = classifier_free_guidance(x, t, cond, params, guidance_scales)
    out = jax.block_until_ready(out)

    ref = _reference(x, t, cond, params, guidance_scales)
    assert out.shape == (B, C, H, W)
    # bf16 MXU operands (+ optional bf16 elementwise chain on v6e/v7x) and the
    # guidance-scale amplification => looser tolerance than pure-f32 compare.
    assert jnp.allclose(out, ref, atol=5e-2, rtol=5e-2), \
        float(jnp.max(jnp.abs(out - ref)))
    print("KERNEL_OK")
</pallas_src>

<mosaic_0001>
module attributes {stable_mosaic.version = 11 : i64} {
  func.func @_cfg_kernel(%arg0: i32, %arg1: i32, %arg2: memref<1x4x128xf32, #tpu.memory_space<vmem>>, %arg3: memref<1x2x32x1xf32, #tpu.memory_space<vmem>>, %arg4: memref<32x4xbf16, #tpu.memory_space<vmem>>, %arg5: memref<4x32xbf16, #tpu.memory_space<vmem>>, %arg6: memref<4x1xf32, #tpu.memory_space<vmem>>, %arg7: memref<1x4x128xf32, #tpu.memory_space<vmem>>) attributes {dimension_semantics = [#tpu.dimension_semantics<parallel>, #tpu.dimension_semantics<parallel>], iteration_bounds = array<i64: 2, 2>, scalar_prefetch = 0 : i64, scratch_operands = 0 : i64, tpu.core_type = #tpu.core_type<tc>, window_params = [{transform_indices = @transform_0, window_bounds = array<i64: 1, 4, 128>}, {transform_indices = @transform_1, window_bounds = array<i64: 1, 2, 32, 1>}, {pipeline_mode = #tpu.pipeline_mode<synchronous>, transform_indices = @transform_2, window_bounds = array<i64: 32, 4>}, {pipeline_mode = #tpu.pipeline_mode<synchronous>, transform_indices = @transform_3, window_bounds = array<i64: 4, 32>}, {pipeline_mode = #tpu.pipeline_mode<synchronous>, transform_indices = @transform_4, window_bounds = array<i64: 4, 1>}, {transform_indices = @transform_5, window_bounds = array<i64: 1, 4, 128>}]} {
    %c0 = arith.constant 0 : index
    %c0_0 = arith.constant 0 : index
    %c0_1 = arith.constant 0 : index
    %0 = vector.load %arg2[%c0, %c0_0, %c0_1] : memref<1x4x128xf32, #tpu.memory_space<vmem>>, vector<1x4x128xf32>
    %1 = vector.shape_cast %0 : vector<1x4x128xf32> to vector<4x128xf32>
    %2 = arith.truncf %1 : vector<4x128xf32> to vector<4x128xbf16>
    %c0_2 = arith.constant 0 : index
    %c0_3 = arith.constant 0 : index
    %3 = vector.load %arg4[%c0_2, %c0_3] : memref<32x4xbf16, #tpu.memory_space<vmem>>, vector<32x4xbf16>
    %cst = arith.constant dense<0.000000e+00> : vector<32x128xf32>
    %4 = tpu.matmul %3, %2, %cst {dimension_numbers = #tpu.dot_dimension_numbers<[1], [0], [0], [1], [0, 0, 1, 1], [], []>} : vector<32x4xbf16>, vector<4x128xbf16>, vector<32x128xf32> -> vector<32x128xf32>
    %c0_4 = arith.constant 0 : index
    %c0_5 = arith.constant 0 : index
    %c0_6 = arith.constant 0 : index
    %c0_7 = arith.constant 0 : index
    %5 = vector.load %arg3[%c0_4, %c0_5, %c0_6, %c0_7] : memref<1x2x32x1xf32, #tpu.memory_space<vmem>>, vector<1x2x32x1xf32>
    %6 = vector.shape_cast %5 : vector<1x2x32x1xf32> to vector<2x32x1xf32>
    %7 = vector.extract_strided_slice %6 {offsets = [0, 0, 0], sizes = [1, 32, 1], strides = [1, 1, 1]} : vector<2x32x1xf32> to vector<1x32x1xf32>
    %8 = vector.shape_cast %7 : vector<1x32x1xf32> to vector<32x1xf32>
    %9 = vector.broadcast %8 : vector<32x1xf32> to vector<32x128xf32>
    %10 = arith.addf %4, %9 : vector<32x128xf32>
    %cst_8 = arith.constant 5.000000e-01 : f32
    %11 = vector.broadcast %cst_8 : f32 to vector<32x128xf32>
    %12 = arith.mulf %10, %11 : vector<32x128xf32>
    %13 = math.tanh %12 : vector<32x128xf32>
    %14 = arith.mulf %12, %13 : vector<32x128xf32>
    %15 = arith.addf %12, %14 : vector<32x128xf32>
    %cst_9 = arith.constant -1.000000e+00 : f32
    %16 = vector.broadcast %cst_9 : f32 to vector<32x128xf32>
    %17 = arith.mulf %15, %16 : vector<32x128xf32>
    %18 = vector.extract_strided_slice %6 {offsets = [1, 0, 0], sizes = [1, 32, 1], strides = [1, 1, 1]} : vector<2x32x1xf32> to vector<1x32x1xf32>
    %19 = vector.shape_cast %18 : vector<1x32x1xf32> to vector<32x1xf32>
    %20 = vector.broadcast %19 : vector<32x1xf32> to vector<32x128xf32>
    %21 = arith.addf %4, %20 : vector<32x128xf32>
    %cst_10 = arith.constant 5.000000e-01 : f32
    %22 = vector.broadcast %cst_10 : f32 to vector<32x128xf32>
    %23 = arith.mulf %21, %22 : vector<32x128xf32>
    %24 = math.tanh %23 : vector<32x128xf32>
    %25 = arith.mulf %23, %24 : vector<32x128xf32>
    %26 = arith.addf %23, %25 : vector<32x128xf32>
    %cst_11 = arith.constant 2.000000e+00 : f32
    %27 = vector.broadcast %cst_11 : f32 to vector<32x128xf32>
    %28 = arith.mulf %26, %27 : vector<32x128xf32>
    %29 = arith.addf %17, %28 : vector<32x128xf32>
    %c0_12 = arith.constant 0 : index
    %c0_13 = arith.constant 0 : index
    %30 = vector.load %arg5[%c0_12, %c0_13] : memref<4x32xbf16, #tpu.memory_space<vmem>>, vector<4x32xbf16>
    %31 = arith.truncf %29 : vector<32x128xf32> to vector<32x128xbf16>
    %cst_14 = arith.constant dense<0.000000e+00> : vector<4x128xf32>
    %32 = tpu.matmul %30, %31, %cst_14 {dimension_numbers = #tpu.dot_dimension_numbers<[1], [0], [0], [1], [0, 0, 1, 1], [], []>} : vector<4x32xbf16>, vector<32x128xbf16>, vector<4x128xf32> -> vector<4x128xf32>
    %c0_15 = arith.constant 0 : index
    %c0_16 = arith.constant 0 : index
    %33 = vector.load %arg6[%c0_15, %c0_16] : memref<4x1xf32, #tpu.memory_space<vmem>>, vector<4x1xf32>
    %34 = vector.broadcast %33 : vector<4x1xf32> to vector<4x128xf32>
    %35 = arith.addf %32, %34 : vector<4x128xf32>
    %c0_17 = arith.constant 0 : index
    %c0_18 = arith.constant 0 : index
    %c0_19 = arith.constant 0 : index
    %36 = vector.load %arg7[%c0_17, %c0_18, %c0_19] : memref<1x4x128xf32, #tpu.memory_space<vmem>>, vector<1x4x128xf32>
    %37 = vector.shape_cast %36 : vector<1x4x128xf32> to vector<4x128xf32>
    %38 = vector.shape_cast %35 : vector<4x128xf32> to vector<1x4x128xf32>
    tpu.vector_store %arg7[%c0_17, %c0_18, %c0_19], %38 {strides = array<i32>} : memref<1x4x128xf32, #tpu.memory_space<vmem>>, vector<1x4x128xf32>,
    return
  }
  func.func @transform_0(%arg0: i32, %arg1: i32) -> (i32, i32, i32) {
    %c0_i32 = arith.constant 0 : i32
    %c0_i32_0 = arith.constant 0 : i32
    return %arg0, %c0_i32, %arg1 : i32, i32, i32
  }
  func.func @transform_1(%arg0: i32, %arg1: i32) -> (i32, i32, i32, i32) {
    %c0_i32 = arith.constant 0 : i32
    %c0_i32_0 = arith.constant 0 : i32
    %c0_i32_1 = arith.constant 0 : i32
    %c0_i32_2 = arith.constant 0 : i32
    return %arg0, %c0_i32, %c0_i32_0, %c0_i32_1 : i32, i32, i32, i32
  }
  func.func @transform_2(%arg0: i32, %arg1: i32) -> (i32, i32) {
    %c0_i32 = arith.constant 0 : i32
    %c0_i32_0 = arith.constant 0 : i32
    %c0_i32_1 = arith.constant 0 : i32
    return %c0_i32, %c0_i32_0 : i32, i32
  }
  func.func @transform_3(%arg0: i32, %arg1: i32) -> (i32, i32) {
    %c0_i32 = arith.constant 0 : i32
    %c0_i32_0 = arith.constant 0 : i32
    %c0_i32_1 = arith.constant 0 : i32
    return %c0_i32, %c0_i32_0 : i32, i32
  }
  func.func @transform_4(%arg0: i32, %arg1: i32) -> (i32, i32) {
    %c0_i32 = arith.constant 0 : i32
    %c0_i32_0 = arith.constant 0 : i32
    %c0_i32_1 = arith.constant 0 : i32
    return %c0_i32, %c0_i32_0 : i32, i32
  }
  func.func @transform_5(%arg0: i32, %arg1: i32) -> (i32, i32, i32) {
    %c0_i32 = arith.constant 0 : i32
    %c0_i32_0 = arith.constant 0 : i32
    return %arg0, %c0_i32, %arg1 : i32, i32, i32
  }
}

</mosaic_0001>

<llo_original>
// kernel: tpu_custom_call.1
$region0: #{tpu_custom_call.1}
  #allocation0 [shape = 'u32[]', space=smem, size = 0x4, offset = 0x4, fixed_abs, tag = 'smem constant byte address 0x4 - core index']
  #allocation1 [shape = 'u32[144,128]{1,0:T(1,128)}', space=vmem, size = 0x12000, scoped, tag = 'internal scratch']
  %s0 = inlined_call_operand.vmem [shape: f32[2,4,256], index: 0, kind: input, shape index: {}]
  %s1 = inlined_call_operand.vmem [shape: f32[2,2,32,1], index: 1, kind: input, shape index: {}]
  %s2 = inlined_call_operand.vmem [shape: bf16[32,4], index: 2, kind: input, shape index: {}]
  %s3 = inlined_call_operand.vmem [shape: bf16[4,32], index: 3, kind: input, shape index: {}]
  %s4 = inlined_call_operand.vmem [shape: f32[4,1], index: 4, kind: input, shape index: {}]
  %s5 = inlined_call_operand.hbm [shape: f32[2,4,256], index: 5, kind: output, shape index: {}]
  %s6 = sld [smem:[#allocation0]]
  $region53: #{tpu_custom_call.1} parent=0
    _
  %s8 = ssub.s32 1, %s6
  %s9 = scalar_select 0, %s8, %s6
  $region1: #{tpu_custom_call.1} parent=0
    #allocation2 [shape = 'u8[4096]{0}', space=vmem, size = 0x1000, scoped, tag = 'output window, operand 0']
    #allocation3 [shape = 's32[2]{0}', space=sflag, size = 0x8, scoped, tag = 'scoped memory for tpu_custom_call.1']
    %10 = vsyncpa [#allocation3], 0
    %s11 = scalar_lea.sflag [#allocation3], 1
    %12 = vsyncpa %s11, 0
    loop: start=0, step=1, limit=6
    $region2: #{tpu_custom_call.1} parent=1 // loop_pre_header
      _
    $region3: #{tpu_custom_call.1} parent=1 // loop_header
      %s14 = sphi 0, %s18
      %p15 = scmp.ge.s32.totalorder %s14, 6
      %s21 = sphi 0, %s33
      %s22 = sphi 0, %s29
      %s23 = sphi 0, %s21
      %s24 = sphi 0, %s22
      %s25 = sphi 0, %s23
      %s26 = sphi 0, %s24
      %s38 = sphi 0, %s40
      %s41 = sphi 0, %s38
      %s42 = sphi 0, %s41
      %s58 = sphi 0, %s42
      %s64 = sphi 0, %s66
      %s67 = sphi 0, %s64
      %s68 = sphi 0, %s67
      %s84 = sphi 0, %s68
      %s88 = sphi 0, %s88
      %s90 = sphi 0, %s88
      %s91 = sphi 0, %s90
      %s105 = sphi 0, %s91
      %s109 = sphi 0, %s109
      %s111 = sphi 0, %s109
      %s112 = sphi 0, %s111
      %s126 = sphi 0, %s112
      %s130 = sphi 0, %s130
      %s132 = sphi 0, %s130
      %s133 = sphi 0, %s132
      %s147 = sphi 0, %s133
      %s155 = sphi 0, %s157
      %s158 = sphi 0, %s155
      %s159 = sphi 0, %s158
      %s175 = sphi 0, %s159
    $region4: #{tpu_custom_call.1} parent=1 // loop_header_branch
      %17 = sbr.rel (%p15) target = $region8
    $region5: #{tpu_custom_call.1} parent=1 // loop_body
      %s19 = ssub.s32 %s14, 1
      %s20 = ssub.s32 %s14, 2
      %s27 = sadd.s32 1, %s22
      %p28 = scmp.ge.s32.totalorder %s27, 2
      %s29 = scalar_select %p28, 0, %s27
      %s30 = sadd.s32 1, %s21
      %s31 = scalar_select %p28, %s30, %s21
      %p32 = scmp.ge.s32.totalorder %s31, 2
      %s33 = scalar_select %p32, 0, %s31
      %s34 = ssub.s32 %s21, %s33
      %s35 = ssub.s32 %s22, %s29
      %s36 = sor.u32 %s34, %s35
      %p37 = scmp.eq.s32.totalorder %s36, 0
      %s39 = sadd.s32 %s38, 1
      %s40 = scalar_select %p37, %s38, %s39
      %p43 = pneg %p37
      %p44 = scmp.eq.s32.totalorder %s14, 3
      %p45 = por %p43, %p44
      %p46 = scmp.ne.s32.totalorder %s38, %s41
      %p47 = scmp.eq.s32.totalorder %s14, 0
      %p48 = por %p46, %p47
      %p49 = scmp.ne.s32.totalorder %s38, %s41
      %p50 = scmp.eq.s32.totalorder %s19, 3
      %p51 = por %p49, %p50
      %p52 = scmp.ne.s32.totalorder %s41, %s42
      %p53 = scmp.eq.s32.totalorder %s19, 0
      %p54 = por %p52, %p53
      %p55 = scmp.ne.s32.totalorder %s41, %s42
      %p56 = scmp.eq.s32.totalorder %s20, 3
      %p57 = por %p55, %p56
      %p59 = scmp.ne.s32.totalorder %s42, %s58
      %p60 = scmp.eq.s32.totalorder %s20, 0
      %p61 = por %p59, %p60
      %s62 = ssub.s32 %s21, %s33
      %p63 = scmp.eq.s32.totalorder %s62, 0
      %s65 = sadd.s32 %s64, 1
      %s66 = scalar_select %p63, %s64, %s65
      %p69 = pneg %p63
      %p70 = scmp.eq.s32.totalorder %s14, 3
      %p71 = por %p69, %p70
      %p72 = scmp.ne.s32.totalorder %s64, %s67
      %p73 = scmp.eq.s32.totalorder %s14, 0
      %p74 = por %p72, %p73
      %p75 = scmp.ne.s32.totalorder %s64, %s67
      %p76 = scmp.eq.s32.totalorder %s19, 3
      %p77 = por %p75, %p76
      %p78 = scmp.ne.s32.totalorder %s67, %s68
      %p79 = scmp.eq.s32.totalorder %s19, 0
      %p80 = por %p78, %p79
      %p81 = scmp.ne.s32.totalorder %s67, %s68
      %p82 = scmp.eq.s32.totalorder %s20, 3
      %p83 = por %p81, %p82
      %p85 = scmp.ne.s32.totalorder %s68, %s84
      %p86 = scmp.eq.s32.totalorder %s20, 0
      %p87 = por %p85, %p86
      %s89 = sadd.s32 %s88, 1
      %p92 = scmp.eq.s32.totalorder %s14, 3
      %p93 = scmp.ne.s32.totalorder %s88, %s90
      %p94 = scmp.eq.s32.totalorder %s14, 0
      %p95 = por %p93, %p94
      %p96 = scmp.ne.s32.totalorder %s88, %s90
      %p97 = scmp.eq.s32.totalorder %s19, 3
      %p98 = por %p96, %p97
      %p99 = scmp.ne.s32.totalorder %s90, %s91
      %p100 = scmp.eq.s32.totalorder %s19, 0
      %p101 = por %p99, %p100
      %p102 = scmp.ne.s32.totalorder %s90, %s91
      %p103 = scmp.eq.s32.totalorder %s20, 3
      %p104 = por %p102, %p103
      %p106 = scmp.ne.s32.totalorder %s91, %s105
      %p107 = scmp.eq.s32.totalorder %s20, 0
      %p108 = por %p106, %p107
      %s110 = sadd.s32 %s109, 1
      %p113 = scmp.eq.s32.totalorder %s14, 3
      %p114 = scmp.ne.s32.totalorder %s109, %s111
      %p115 = scmp.eq.s32.totalorder %s14, 0
      %p116 = por %p114, %p115
      %p117 = scmp.ne.s32.totalorder %s109, %s111
      %p118 = scmp.eq.s32.totalorder %s19, 3
      %p119 = por %p117, %p118
      %p120 = scmp.ne.s32.totalorder %s111, %s112
      %p121 = scmp.eq.s32.totalorder %s19, 0
      %p122 = por %p120, %p121
      %p123 = scmp.ne.s32.totalorder %s111, %s112
      %p124 = scmp.eq.s32.totalorder %s20, 3
      %p125 = por %p123, %p124
      %p127 = scmp.ne.s32.totalorder %s112, %s126
      %p128 = scmp.eq.s32.totalorder %s20, 0
      %p129 = por %p127, %p128
      %s131 = sadd.s32 %s130, 1
      %p134 = scmp.eq.s32.totalorder %s14, 3
      %p135 = scmp.ne.s32.totalorder %s130, %s132
      %p136 = scmp.eq.s32.totalorder %s14, 0
      %p137 = por %p135, %p136
      %p138 = scmp.ne.s32.totalorder %s130, %s132
      %p139 = scmp.eq.s32.totalorder %s19, 3
      %p140 = por %p138, %p139
      %p141 = scmp.ne.s32.totalorder %s132, %s133
      %p142 = scmp.eq.s32.totalorder %s19, 0
      %p143 = por %p141, %p142
      %p144 = scmp.ne.s32.totalorder %s132, %s133
      %p145 = scmp.eq.s32.totalorder %s20, 3
      %p146 = por %p144, %p145
      %p148 = scmp.ne.s32.totalorder %s133, %s147
      %p149 = scmp.eq.s32.totalorder %s20, 0
      %p150 = por %p148, %p149
      %s151 = ssub.s32 %s21, %s33
      %s152 = ssub.s32 %s22, %s29
      %s153 = sor.u32 %s151, %s152
      %p154 = scmp.eq.s32.totalorder %s153, 0
      %s156 = sadd.s32 %s155, 1
      %s157 = scalar_select %p154, %s155, %s156
      %p160 = pneg %p154
      %p161 = scmp.eq.s32.totalorder %s14, 3
      %p162 = por %p160, %p161
      %p163 = scmp.ne.s32.totalorder %s155, %s158
      %p164 = scmp.eq.s32.totalorder %s14, 0
      %p165 = por %p163, %p164
      %p166 = scmp.ne.s32.totalorder %s155, %s158
      %p167 = scmp.eq.s32.totalorder %s19, 3
      %p168 = por %p166, %p167
      %p169 = scmp.ne.s32.totalorder %s158, %s159
      %p170 = scmp.eq.s32.totalorder %s19, 0
      %p171 = por %p169, %p170
      %p172 = scmp.ne.s32.totalorder %s158, %s159
      %p173 = scmp.eq.s32.totalorder %s20, 3
      %p174 = por %p172, %p173
      %p176 = scmp.ne.s32.totalorder %s159, %s175
      %p177 = scmp.eq.s32.totalorder %s20, 0
      %p178 = por %p176, %p177
      %p179 = scmp.le.s32.totalorder 1, %s14
      %p180 = scmp.lt.s32.totalorder %s14, 5
      %p181 = pnand %p179, %p180
      %p182 = pneg %p181
      // Predicated region
      $region9: #{tpu_custom_call.1} parent=5 // pred_check
        _
      $region10: #{tpu_custom_call.1} parent=5 // pred_check_branch
        %184 = sbr.rel (%p181) target = $region12
      $region11: #{tpu_custom_call.1} parent=5 // pred_region
        %s185 = ssub.s32 %s14, 1
        // Predicated region
        $region13: #{tpu_custom_call.1} parent=11 // pred_check
          %p186 = pneg %p101
        $region14: #{tpu_custom_call.1} parent=11 // pred_check_branch
          %188 = sbr.rel (%p186) target = $region16
        $region15: #{tpu_custom_call.1} parent=11 // pred_region
          _
        $region16: #{tpu_custom_call.1} parent=11 // pred_fallthru
          _
        // Predicated region
        $region17: #{tpu_custom_call.1} parent=11 // pred_check
          %p189 = pneg %p122
        $region18: #{tpu_custom_call.1} parent=11 // pred_check_branch
          %191 = sbr.rel (%p189) target = $region20
        $region19: #{tpu_custom_call.1} parent=11 // pred_region
          _
        $region20: #{tpu_custom_call.1} parent=11 // pred_fallthru
          _
        // Predicated region
        $region21: #{tpu_custom_call.1} parent=11 // pred_check
          %p192 = pneg %p143
        $region22: #{tpu_custom_call.1} parent=11 // pred_check_branch
          %194 = sbr.rel (%p192) target = $region24
        $region23: #{tpu_custom_call.1} parent=11 // pred_region
          _
        $region24: #{tpu_custom_call.1} parent=11 // pred_fallthru
          _
      $region12: #{tpu_custom_call.1} parent=5 // pred_fallthru
        _
      %p195 = scmp.lt.s32.totalorder %s14, 4
      // Predicated region
      $region25: #{tpu_custom_call.1} parent=5 // pred_check
        %p196 = pneg %p195
      $region26: #{tpu_custom_call.1} parent=5 // pred_check_branch
        %198 = sbr.rel (%p196) target = $region28
      $region27: #{tpu_custom_call.1} parent=5 // pred_region
        // Predicated region
        $region29: #{tpu_custom_call.1} parent=27 // pred_check
          %p199 = pneg %p48
        $region30: #{tpu_custom_call.1} parent=27 // pred_check_branch
          %201 = sbr.rel (%p199) target = $region32
        $region31: #{tpu_custom_call.1} parent=27 // pred_region
          %p202 = scmp.lt.s32.totalorder %s21, 1
          %s203 = scalar_select %p202, %s21, 1
          %p204 = scmp.lt.s32.totalorder %s22, 1
          %s205 = scalar_select %p204, %s22, 1
          %s206 = smul.addr %s203, 2
          %s207 = sadd.s32 %s205, %s206
          %s208 = smul.addr %s207, 4
          %s209 = scalar_lea.vmem %s0, %s208
        $region32: #{tpu_custom_call.1} parent=27 // pred_fallthru
          _
        // Predicated region
        $region33: #{tpu_custom_call.1} parent=27 // pred_check
          %p210 = pneg %p74
        $region34: #{tpu_custom_call.1} parent=27 // pred_check_branch
          %212 = sbr.rel (%p210) target = $region36
        $region35: #{tpu_custom_call.1} parent=27 // pred_region
          %p213 = scmp.lt.s32.totalorder %s21, 1
          %s214 = scalar_select %p213, %s21, 1
          %s215 = smul.addr %s214, 8
          %s216 = smul.addr %s215, 8
          %s217 = scalar_lea.vmem %s1, %s216
        $region36: #{tpu_custom_call.1} parent=27 // pred_fallthru
          _
      $region28: #{tpu_custom_call.1} parent=5 // pred_fallthru
        _
      %p218 = scmp.le.s32.totalorder 1, %s14
      %p219 = scmp.lt.s32.totalorder %s14, 5
      %p220 = pnand %p218, %p219
      %p221 = pneg %p220
      // Predicated region
      $region37: #{tpu_custom_call.1} parent=5 // pred_check
        _
      $region38: #{tpu_custom_call.1} parent=5 // pred_check_branch
        %223 = sbr.rel (%p220) target = $region40
      $region39: #{tpu_custom_call.1} parent=5 // pred_region
        %s224 = ssub.s32 %s14, 1
        %p225 = scmp.lt.s32.totalorder %s23, 1
        %s226 = scalar_select %p225, %s23, 1
        %p227 = scmp.lt.s32.totalorder %s24, 1
        %s228 = scalar_select %p227, %s24, 1
        %s229 = smul.addr %s226, 2
        %s230 = sadd.s32 %s228, %s229
        %s231 = smul.addr %s230, 4
        %s232 = scalar_lea.vmem %s0, %s231
        %p233 = pneg %p54
        %p234 = pneg %p51
        %p235 = scmp.lt.s32.totalorder %s23, 1
        %s236 = scalar_select %p235, %s23, 1
        %s237 = smul.addr %s236, 8
        %s238 = smul.addr %s237, 8
        %s239 = scalar_lea.vmem %s1, %s238
        %p240 = pneg %p80
        %p241 = pneg %p77
        %p242 = pneg %p101
        %p243 = pneg %p98
        %p244 = pneg %p122
        %p245 = pneg %p119
        %p246 = pneg %p143
        %p247 = pneg %p140
        %p248 = pneg %p171
        %p249 = pneg %p168
        %s250 = sand.u32 %s158, 1
        %s251 = scalar_lea.sflag [#allocation3], %s250
        %s252 = sand.u32 %s158, 1
        %s253 = smul.addr %s252, 4
        %s254 = scalar_lea.vmem [#allocation2], %s253
        %p255 = scmp.lt.s32.totalorder %s23, 1
        %s256 = scalar_select %p255, %s23, 1
        %p257 = scmp.lt.s32.totalorder %s24, 1
        %s258 = scalar_select %p257, %s24, 1
        %s259 = smul.addr %s256, 2
        %s260 = sadd.s32 %s258, %s259
        %s261 = smul.addr %s260, 4
        %s262 = scalar_lea.vmem %s0, %s261
        %p263 = scmp.lt.s32.totalorder %s23, 1
        %s264 = scalar_select %p263, %s23, 1
        %s265 = smul.addr %s264, 8
        %s266 = smul.addr %s265, 8
        %s267 = scalar_lea.vmem %s1, %s266
        %v269 = vld [vmem:[%s262] sm:$0xf]
        %v270 = vpack.c.bf16 %v269, %v269
        %v271 = vld [vmem:[%s2] sm:$0xf]
        %v272 = vld [vmem:[%s2 + $0x4] sm:$0xf]
        %v273 = vld [vmem:[%s2 + $0x8] sm:$0xf]
        %v274 = vld [vmem:[%s2 + $0xc] sm:$0xf]
        %v279 = vunpack.c.l.b16 %v271
        %v280 = vunpack.c.l.b16 %v272
        %v281 = vunpack.c.l.b16 %v273
        %v282 = vunpack.c.l.b16 %v274
        %v283 = vpack.c.b16 %v280, %v279
        %v284 = vpack.c.b16 %v282, %v281
        %vm285 = vcmask 31744
        %v287 = vsel %vm285, %v283, 0
        %v290 = vsel %vm285, %v284, 0
        %vm292 = vcmask 1041408
        %v294 = vsel %vm292, %v270, 0
        %296 = vmatprep.subr.bf16.mxu0 0
        %297 = vmatpush1.bf16.msra.mxu0 %v294
        %298 = vmatprep.subr.bf16.mxu0 0
        %299 = vmatpush1.bf16.msra.mxu0 0
        %300 = vmatprep.subr.bf16.mxu0 0
        %301 = vmatpush1.bf16.msra.mxu0 0
        %302 = vmatprep.subr.bf16.mxu0 0
        %303 = vmatpush1.bf16.msra.mxu0 0
        %304 = vmatprep.subr.bf16.mxu0 0
        %305 = vmatpush1.bf16.msra.mxu0 0
        %306 = vmatprep.subr.bf16.mxu0 0
        %307 = vmatpush1.bf16.msra.mxu0 0
        %308 = vmatprep.subr.bf16.mxu0 0
        %309 = vmatpush1.bf16.msra.mxu0 0
        %310 = vmatprep.subr.bf16.mxu0 0
        %311 = vmatpush1.bf16.msra.mxu0 0
        %312 = vmatprep.subr.bf16.mxu0 0
        %313 = vmatpush1.bf16.msra.mxu0 0
        %314 = vmatprep.subr.bf16.mxu0 0
        %315 = vmatpush1.bf16.msra.mxu0 0
        %316 = vmatprep.subr.bf16.mxu0 0
        %317 = vmatpush1.bf16.msra.mxu0 0
        %318 = vmatprep.subr.bf16.mxu0 0
        %319 = vmatpush1.bf16.msra.mxu0 0
        %320 = vmatprep.subr.bf16.mxu0 0
        %321 = vmatpush1.bf16.msra.mxu0 0
        %322 = vmatprep.subr.bf16.mxu0 0
        %323 = vmatpush1.bf16.msra.mxu0 0
        %324 = vmatprep.subr.bf16.mxu0 0
        %325 = vmatpush1.bf16.msra.mxu0 0
        %326 = vmatprep.subr.bf16.mxu0 0
        %327 = vmatpush1.bf16.msra.mxu0 0
        %328 = vmatprep.mubr.bf16.mxu0 0
        %329 = vmatmul.mubr.bf16.gmra.mrb[0].mxu0 %v287
        %v330 = vpop.f32.mrb[0].mxu0
        %v331 = vadd.f32 0.0, %v330
        %v332 = vpop.f32.mrb[0].mxu0
        %v333 = vpop.f32.mrb[0].mxu0
        %v334 = vadd.f32 0.0, %v333
        %v335 = vpop.f32.mrb[0].mxu0
        %336 = vmatprep.mubr.bf16.mxu0 0
        %337 = vmatmul.mubr.bf16.gmra.mrb[0].mxu0 %v290
        %v338 = vpop.f32.mrb[0].mxu0
        %v339 = vadd.f32 0.0, %v338
        %v340 = vpop.f32.mrb[0].mxu0
        %v341 = vpop.f32.mrb[0].mxu0
        %v342 = vadd.f32 0.0, %v341
        %v343 = vpop.f32.mrb[0].mxu0
        %344 = vdwg.mxu0
        %v345 = vld [vmem:[%s267] sm:$0xff]
        %v346 = vld [vmem:[%s267 + $0x8] sm:$0xff]
        %v347 = vld [vmem:[%s267 + $0x10] sm:$0xff]
        %v348 = vld [vmem:[%s267 + $0x18] sm:$0xff]
        %v349 = vld [vmem:[%s267 + $0x20] sm:$0xff]
        %v350 = vld [vmem:[%s267 + $0x28] sm:$0xff]
        %v351 = vld [vmem:[%s267 + $0x30] sm:$0xff]
        %v352 = vld [vmem:[%s267 + $0x38] sm:$0xff]
        %354 = vset.pattern.permute.xlu0 0
        %355 = vperm.xlu0 %354, %v345
        %v356 = vpop.permute.xlu0 %355
        %359 = vset.pattern.permute.xlu0 0
        %360 = vperm.xlu0 %359, %v346
        %v361 = vpop.permute.xlu0 %360
        %364 = vset.pattern.permute.xlu0 0
        %365 = vperm.xlu0 %364, %v347
        %v366 = vpop.permute.xlu0 %365
        %369 = vset.pattern.permute.xlu0 0
        %370 = vperm.xlu0 %369, %v348
        %v371 = vpop.permute.xlu0 %370
        %v373 = vadd.f32 %v331, %v356
        %v374 = vadd.f32 %v334, %v361
        %v375 = vadd.f32 %v339, %v366
        %v376 = vadd.f32 %v342, %v371
        %v377 = vmul.f32 %v373, 0.5
        %v378 = vmul.f32 %v374, 0.5
        %v379 = vmul.f32 %v375, 0.5
        %v380 = vmul.f32 %v376, 0.5
        %v381 = vtanh.pop %v377
        %v382 = vtanh.pop %v378
        %v383 = vtanh.pop %v379
        %v384 = vtanh.pop %v380
        %v385 = vmul.f32 %v377, %v381
        %v386 = vmul.f32 %v378, %v382
        %v387 = vmul.f32 %v379, %v383
        %v388 = vmul.f32 %v380, %v384
        %v389 = vadd.f32 %v377, %v385
        %v390 = vadd.f32 %v378, %v386
        %v391 = vadd.f32 %v379, %v387
        %v392 = vadd.f32 %v380, %v388
        %v393 = vmul.f32 %v389, -1.0
        %v394 = vmul.f32 %v390, -1.0
        %v395 = vmul.f32 %v391, -1.0
        %v396 = vmul.f32 %v392, -1.0
        %398 = vset.pattern.permute.xlu0 0
        %399 = vperm.xlu0 %398, %v349
        %v400 = vpop.permute.xlu0 %399
        %403 = vset.pattern.permute.xlu0 0
        %404 = vperm.xlu0 %403, %v350
        %v405 = vpop.permute.xlu0 %404
        %408 = vset.pattern.permute.xlu0 0
        %409 = vperm.xlu0 %408, %v351
        %v410 = vpop.permute.xlu0 %409
        %413 = vset.pattern.permute.xlu0 0
        %414 = vperm.xlu0 %413, %v352
        %v415 = vpop.permute.xlu0 %414
        %v417 = vadd.f32 %v331, %v400
        %v418 = vadd.f32 %v334, %v405
        %v419 = vadd.f32 %v339, %v410
        %v420 = vadd.f32 %v342, %v415
        %v421 = vmul.f32 %v417, 0.5
        %v422 = vmul.f32 %v418, 0.5
        %v423 = vmul.f32 %v419, 0.5
        %v424 = vmul.f32 %v420, 0.5
        %v425 = vtanh.pop %v421
        %v426 = vtanh.pop %v422
        %v427 = vtanh.pop %v423
        %v428 = vtanh.pop %v424
        %v429 = vmul.f32 %v421, %v425
        %v430 = vmul.f32 %v422, %v426
        %v431 = vmul.f32 %v423, %v427
        %v432 = vmul.f32 %v424, %v428
        %v433 = vadd.f32 %v421, %v429
        %v434 = vadd.f32 %v422, %v430
        %v435 = vadd.f32 %v423, %v431
        %v436 = vadd.f32 %v424, %v432
        %v437 = vmul.f32 %v433, 2.0
        %v438 = vmul.f32 %v434, 2.0
        %v439 = vmul.f32 %v435, 2.0
        %v440 = vmul.f32 %v436, 2.0
        %v441 = vadd.f32 %v393, %v437
        %v442 = vadd.f32 %v394, %v438
        %v443 = vadd.f32 %v395, %v439
        %v444 = vadd.f32 %v396, %v440
        %v445 = vld [vmem:[%s3] sm:$0x3]
        %v446 = vpack.c.bf16 %v442, %v441
        %v447 = vpack.c.bf16 %v444, %v443
        %v448 = vld [vmem:[%s4] sm:$0xf]
        %450 = vset.pattern.permute.xlu0 0
        %451 = vperm.xlu0 %450, %v448
        %v452 = vpop.permute.xlu0 %451
        %vm454 = vcmask 261120
        %v456 = vsel %vm454, %v445, 0
        %458 = vmatprep.subr.bf16.mxu0 0
        %459 = vmatpush1.bf16.msra.mxu0 %v446
        %460 = vmatprep.subr.bf16.mxu0 0
        %461 = vmatpush1.bf16.msra.mxu0 %v447
        %462 = vmatprep.subr.bf16.mxu0 0
        %463 = vmatpush1.bf16.msra.mxu0 0
        %464 = vmatprep.subr.bf16.mxu0 0
        %465 = vmatpush1.bf16.msra.mxu0 0
        %466 = vmatprep.subr.bf16.mxu0 0
        %467 = vmatpush1.bf16.msra.mxu0 0
        %468 = vmatprep.subr.bf16.mxu0 0
        %469 = vmatpush1.bf16.msra.mxu0 0
        %470 = vmatprep.subr.bf16.mxu0 0
        %471 = vmatpush1.bf16.msra.mxu0 0
        %472 = vmatprep.subr.bf16.mxu0 0
        %473 = vmatpush1.bf16.msra.mxu0 0
        %474 = vmatprep.subr.bf16.mxu0 0
        %475 = vmatpush1.bf16.msra.mxu0 0
        %476 = vmatprep.subr.bf16.mxu0 0
        %477 = vmatpush1.bf16.msra.mxu0 0
        %478 = vmatprep.subr.bf16.mxu0 0
        %479 = vmatpush1.bf16.msra.mxu0 0
        %480 = vmatprep.subr.bf16.mxu0 0
        %481 = vmatpush1.bf16.msra.mxu0 0
        %482 = vmatprep.subr.bf16.mxu0 0
        %483 = vmatpush1.bf16.msra.mxu0 0
        %484 = vmatprep.subr.bf16.mxu0 0
        %485 = vmatpush1.bf16.msra.mxu0 0
        %486 = vmatprep.subr.bf16.mxu0 0
        %487 = vmatpush1.bf16.msra.mxu0 0
        %488 = vmatprep.subr.bf16.mxu0 0
        %489 = vmatpush1.bf16.msra.mxu0 0
        %490 = vmatprep.mubr.bf16.mxu0 0
        %491 = vmatmul.mubr.bf16.gmra.mrb[0].mxu0 %v456
        %v492 = vpop.f32.mrb[0].mxu0
        %v493 = vadd.f32 %v452, %v492
        %v494 = vpop.f32.mrb[0].mxu0
        %v495 = vpop.f32.mrb[0].mxu0
        %v496 = vpop.f32.mrb[0].mxu0
        %497 = vdwg.mxu0
        %498 = vst [vmem:[%s254] sm:$0xf] %v493
        %s499 = sand.u32 %s158, 1
        %s500 = scalar_lea.sflag [#allocation3], %s499
        %s501 = sand.u32 %s158, 1
        %s502 = smul.addr %s501, 4
        %s503 = scalar_lea.vmem [#allocation2], %s502
        // Predicated region
        $region41: #{tpu_custom_call.1} parent=39 // pred_check
          %p504 = pneg %p168
        $region42: #{tpu_custom_call.1} parent=39 // pred_check_branch
          %506 = sbr.rel (%p504) target = $region44
        $region43: #{tpu_custom_call.1} parent=39 // pred_region
          %s508 = ssub.s32 64, 64
          %509 = vsyncadd %s500, %s508
          %s510 = smul.addr %s23, 2
          %s511 = sadd.s32 %s24, %s510
          %s512 = smul.addr %s511, 64
          %s513 = scalar_lea.hbm %s5, %s512
          %s515 = sshll.u32 %s503, 4
          %s516 = int_to_ptr.vmem [resolvable:$true] %s515
          %518 = dma.vmem_to_hbm [thread:$0]  %s516, 64, %s513, %s500
        $region44: #{tpu_custom_call.1} parent=39 // pred_fallthru
          _
      $region40: #{tpu_custom_call.1} parent=5 // pred_fallthru
        _
      %p519 = scmp.le.s32.totalorder 2, %s14
      // Predicated region
      $region45: #{tpu_custom_call.1} parent=5 // pred_check
        %p520 = pneg %p519
      $region46: #{tpu_custom_call.1} parent=5 // pred_check_branch
        %522 = sbr.rel (%p520) target = $region48
      $region47: #{tpu_custom_call.1} parent=5 // pred_region
        %s523 = ssub.s32 %s14, 2
        // Predicated region
        $region49: #{tpu_custom_call.1} parent=47 // pred_check
          %p524 = pneg %p174
        $region50: #{tpu_custom_call.1} parent=47 // pred_check_branch
          %526 = sbr.rel (%p524) target = $region52
        $region51: #{tpu_custom_call.1} parent=47 // pred_region
          %s527 = sand.u32 %s159, 1
          %s528 = scalar_lea.sflag [#allocation3], %s527
          %s529 = sand.u32 %s159, 1
          %s530 = smul.addr %s529, 4
          %s531 = scalar_lea.vmem [#allocation2], %s530
          %532 = dma.done %s528, 64
        $region52: #{tpu_custom_call.1} parent=47 // pred_fallthru
          _
      $region48: #{tpu_custom_call.1} parent=5 // pred_fallthru
        _
    $region6: #{tpu_custom_call.1} parent=1 // loop_footer
      %s18 = sadd.s32 1, %s14
    $region7: #{tpu_custom_call.1} parent=1 // loop_footer_branch
      %13 = sbr.rel target = $region3
    $region8: #{tpu_custom_call.1} parent=1 // loop_exit
      _
    %533 = vsyncpa [#allocation3], 1
    %s534 = scalar_lea.sflag [#allocation3], 1
    %535 = vsyncpa %s534, 1

</llo_original>
